<compile_context>
chip_gen: v6e
topology: v6e:2x2x1
jax: 0.10.0
libtpu: 0.0.40
codegen_flags: <defaults>
</compile_context>

<pallas_src>
import functools

import jax
import jax.numpy as jnp
from jax.experimental import pallas as pl
from jax.experimental.pallas import tpu as pltpu

NEG_SLOPE = 0.01        # F.leaky_relu default negative_slope
_LANE = 128             # pad every feature dim to a multiple of the lane width
_SUBLANE = 8
_NEG_BIG = -1e30        # mask value for padded output lanes (exp underflows to 0)


def _round_up(x, m):
    return (x + m - 1) // m * m


def _vmem_limit_bytes():
    """Generation-aware VMEM limit: ~100 MiB on 128-MiB parts (v5e/v6e),
    ~56 MiB on v7x (64 MiB/TC). Safe fallback if the query is unavailable."""
    cap = 128 << 20
    try:
        info = pltpu.get_tpu_info()
        cap = int(getattr(info, "vmem_capacity_bytes", cap))
    except Exception:
        pass
    return min(max(cap - (8 << 20), 32 << 20), 100 << 20)


def _mlp_kernel(num_layers, output_dim, dropout, seed_ref, x_ref, *refs):
    """Fused MLP forward for one row tile.

    refs = (w0, b0, w1, b1, ..., w_{L-1}, b_{L-1}, o_ref).
    Weights are pre-padded to (in_pad, out_pad), stored (in, out), so each
    layer is a plain  h @ W + b  on the MXU with f32 accumulation.
    """
    o_ref = refs[-1]
    wb = refs[:-1]

    if 0.0 < dropout < 1.0:
        # per-call seed mixed with the row-tile id -> different masks per tile & call
        pltpu.prng_seed(seed_ref[0] + pl.program_id(0))

    h = x_ref[...]                                     # (tile_n, in_pad)

    # hidden layers: linear + leaky_relu (+ dropout mask; rescale folded into W)
    for l in range(num_layers - 1):
        w = wb[2 * l][...]
        b = wb[2 * l + 1][...]                         # (1, out_pad) f32, broadcasts
        y = jnp.dot(h.astype(w.dtype), w, preferred_element_type=jnp.float32) + b
        h = jnp.maximum(y, NEG_SLOPE * y).astype(w.dtype)   # carry bf16 activations
        if dropout >= 1.0:
            h = jnp.zeros_like(h)
        elif dropout > 0.0:
            bits = pltpu.bitcast(pltpu.prng_random_bits(h.shape), jnp.uint32)
            thresh = jnp.uint32(round(dropout * 4294967295.0))
            keep = bits >= thresh                      # P(keep) ~= 1 - dropout
            h = jnp.where(keep, h, jnp.zeros_like(h))  # 1/(1-p) folded into next W

    # final layer: linear + numerically stable log_softmax over the REAL lanes only
    w = wb[-2][...]
    b = wb[-1][...]
    y = jnp.dot(h.astype(w.dtype), w, preferred_element_type=jnp.float32) + b
    col = jax.lax.broadcasted_iota(jnp.int32, y.shape, 1)
    y = jnp.where(col < output_dim, y, _NEG_BIG)       # padded lanes don't join softmax
    m = jnp.max(y, axis=-1, keepdims=True)
    z = y - m
    lse = jnp.log(jnp.sum(jnp.exp(z), axis=-1, keepdims=True))
    o_ref[...] = (z - lse).astype(o_ref.dtype)


def init_mlp_params(key, input_dim, hidden_dim, output_dim, num_layers):
    """Deterministic init mirroring nn.Linear shapes, stored as (in, out)."""
    dims = [input_dim] + [hidden_dim] * (num_layers - 1) + [output_dim]
    params = []
    for i in range(num_layers):
        key, kw, kb = jax.random.split(key, 3)
        bound = 1.0 / (dims[i] ** 0.5)
        w = jax.random.uniform(kw, (dims[i], dims[i + 1]), jnp.float32, -bound, bound)
        b = jax.random.uniform(kb, (dims[i + 1],), jnp.float32, -bound, bound)
        params.append((w, b))
    return params


def prepare_params(params, compute_dtype=jnp.bfloat16, dropout=0.0):
    """One-time prep OUTSIDE the hot path: pad feature dims to 128, cast weights
    to the MXU compute dtype (bf16), keep bias f32, and fold the dropout
    1/(1-p) rescale into the weights of every layer that consumes a dropped-out
    activation (layers 1..L-1)."""
    scale = 1.0 / (1.0 - dropout) if 0.0 < dropout < 1.0 else 1.0
    prepped = []
    for i, (w, b) in enumerate(params):
        if i > 0 and scale != 1.0:
            w = w * scale
        in_dim, out_dim = w.shape
        in_pad, out_pad = _round_up(in_dim, _LANE), _round_up(out_dim, _LANE)
        w_p = jnp.zeros((in_pad, out_pad), compute_dtype)
        w_p = w_p.at[:in_dim, :out_dim].set(w.astype(compute_dtype))
        b_p = jnp.zeros((1, out_pad), jnp.float32).at[0, :out_dim].set(b)
        prepped.append((w_p, b_p))
    return prepped


@functools.partial(
    jax.jit, static_argnames=("output_dim", "dropout", "tile_n", "out_dtype"))
def mlp_forward(x, params, *, output_dim, dropout=0.0, seed=0, tile_n=512,
                out_dtype=jnp.float32):
    n, d = x.shape
    num_layers = len(params)
    d_pad = params[0][0].shape[0]
    o_pad = params[-1][0].shape[1]
    compute_dtype = params[0][0].dtype

    # Row tile: as large as requested, but keep >= 2 grid steps whenever the
    # batch allows so the "parallel" axis can shard across TensorCores (v7x).
    if n >= 2 * _SUBLANE:
        max_tile = _round_up((n + 1) // 2, _SUBLANE)
    else:
        max_tile = _round_up(max(n, 1), _SUBLANE)
    tile_n = _round_up(max(_SUBLANE, min(tile_n, max_tile)), _SUBLANE)
    n_pad = _round_up(n, tile_n)

    # Feed x directly when already lane/row aligned (avoids a separate XLA
    # pad+cast HBM round trip); otherwise pad once, writing bf16 to halve bytes.
    if d == d_pad and n == n_pad:
        x_in = x                                   # cast to bf16 in-kernel
    else:
        x_in = jnp.zeros((n_pad, d_pad), compute_dtype)
        x_in = x_in.at[:n, :d].set(x.astype(compute_dtype))

    flat = []
    for w, b in params:
        flat += [w, b]

    weights_single_buf = pl.Buffered(1)            # constant blocks: fetch once
    in_specs = [
        pl.BlockSpec(memory_space=pltpu.MemorySpace.SMEM),           # seed scalar
        pl.BlockSpec((tile_n, x_in.shape[1]), lambda i: (i, 0)),     # row tile of x
    ]
    for w, b in params:
        in_specs.append(pl.BlockSpec(w.shape, lambda i: (0, 0),
                                     pipeline_mode=weights_single_buf))
        in_specs.append(pl.BlockSpec(b.shape, lambda i: (0, 0),
                                     pipeline_mode=weights_single_buf))

    kernel = functools.partial(_mlp_kernel, num_layers, output_dim, float(dropout))
    seed_arr = jnp.asarray(seed, jnp.int32).reshape((1,))

    out = pl.pallas_call(
        kernel,
        out_shape=jax.ShapeDtypeStruct((n_pad, o_pad), out_dtype),
        grid=(n_pad // tile_n,),
        in_specs=in_specs,
        out_specs=pl.BlockSpec((tile_n, o_pad), lambda i: (i, 0)),
        compiler_params=pltpu.CompilerParams(
            dimension_semantics=("parallel",),     # shard row tiles across TCs
            vmem_limit_bytes=_vmem_limit_bytes(),  # generation-aware budget
        ),
    )(seed_arr, x_in, *flat)

    # Downstream consumers that can gather by index may keep the padded
    # (n_pad, o_pad) layout and skip this narrow-lane slice.
    return out[:n, :output_dim]


if __name__ == "__main__":
    key = jax.random.PRNGKey(0)

    batch = 8
    input_dim = 16
    hidden_dim = 32
    output_dim = 8
    num_layers = 3
    dropout = 0.0

    key, kx, kp = jax.random.split(key, 3)
    x = jax.random.normal(kx, (batch, input_dim), jnp.float32)
    raw_params = init_mlp_params(kp, input_dim, hidden_dim, output_dim, num_layers)
    params = prepare_params(raw_params, compute_dtype=jnp.bfloat16, dropout=dropout)

    out = mlp_forward(x, params, output_dim=output_dim, dropout=dropout, seed=0)
    out = jax.block_until_ready(out)
    assert out.shape == (batch, output_dim)

    # sanity 1: log_softmax rows should (log-)sum to ~0
    row_sums = jnp.sum(jnp.exp(out), axis=-1)
    assert bool(jnp.all(jnp.abs(row_sums - 1.0) < 1e-3)), row_sums

    # sanity 2: matches a plain-JAX f32 reference (loose tol: bf16 MXU inputs)
    def ref_forward(xr, prms):
        h = xr
        for w, b in prms[:-1]:
            y = h @ w + b
            h = jnp.maximum(y, NEG_SLOPE * y)
        w, b = prms[-1]
        return jax.nn.log_softmax(h @ w + b, axis=-1)

    ref = ref_forward(x, raw_params)
    max_err = float(jnp.max(jnp.abs(out - ref)))
    assert max_err < 0.1, max_err

    print("KERNEL_OK")
</pallas_src>

<mosaic_0001>
module attributes {stable_mosaic.version = 11 : i64} {
  func.func @_mlp_kernel(%arg0: i32, %arg1: memref<1xi32, #tpu.memory_space<smem>>, %arg2: memref<8x128xbf16, #tpu.memory_space<vmem>>, %arg3: memref<128x128xbf16, #tpu.memory_space<vmem>>, %arg4: memref<1x128xf32, #tpu.memory_space<vmem>>, %arg5: memref<128x128xbf16, #tpu.memory_space<vmem>>, %arg6: memref<1x128xf32, #tpu.memory_space<vmem>>, %arg7: memref<128x128xbf16, #tpu.memory_space<vmem>>, %arg8: memref<1x128xf32, #tpu.memory_space<vmem>>, %arg9: memref<8x128xf32, #tpu.memory_space<vmem>>) attributes {dimension_semantics = [#tpu.dimension_semantics<parallel>], iteration_bounds = array<i64: 1>, scalar_prefetch = 0 : i64, scratch_operands = 0 : i64, tpu.core_type = #tpu.core_type<tc>, window_params = [{transform_indices = @transform_0, window_bounds = array<i64: 1>}, {transform_indices = @transform_1, window_bounds = array<i64: 8, 128>}, {pipeline_mode = #tpu.pipeline_mode<synchronous>, transform_indices = @transform_2, window_bounds = array<i64: 128, 128>}, {pipeline_mode = #tpu.pipeline_mode<synchronous>, transform_indices = @transform_3, window_bounds = array<i64: 1, 128>}, {pipeline_mode = #tpu.pipeline_mode<synchronous>, transform_indices = @transform_4, window_bounds = array<i64: 128, 128>}, {pipeline_mode = #tpu.pipeline_mode<synchronous>, transform_indices = @transform_5, window_bounds = array<i64: 1, 128>}, {pipeline_mode = #tpu.pipeline_mode<synchronous>, transform_indices = @transform_6, window_bounds = array<i64: 128, 128>}, {pipeline_mode = #tpu.pipeline_mode<synchronous>, transform_indices = @transform_7, window_bounds = array<i64: 1, 128>}, {transform_indices = @transform_8, window_bounds = array<i64: 8, 128>}]} {
    %c0 = arith.constant 0 : index
    %c0_0 = arith.constant 0 : index
    %0 = vector.load %arg2[%c0, %c0_0] : memref<8x128xbf16, #tpu.memory_space<vmem>>, vector<8x128xbf16>
    %c0_1 = arith.constant 0 : index
    %c0_2 = arith.constant 0 : index
    %1 = vector.load %arg3[%c0_1, %c0_2] : memref<128x128xbf16, #tpu.memory_space<vmem>>, vector<128x128xbf16>
    %c0_3 = arith.constant 0 : index
    %c0_4 = arith.constant 0 : index
    %2 = vector.load %arg4[%c0_3, %c0_4] : memref<1x128xf32, #tpu.memory_space<vmem>>, vector<1x128xf32>
    %cst = arith.constant dense<0.000000e+00> : vector<8x128xf32>
    %3 = tpu.matmul %0, %1, %cst {dimension_numbers = #tpu.dot_dimension_numbers<[1], [0], [0], [1], [0, 0, 1, 1], [], []>} : vector<8x128xbf16>, vector<128x128xbf16>, vector<8x128xf32> -> vector<8x128xf32>
    %4 = vector.broadcast %2 : vector<1x128xf32> to vector<8x128xf32>
    %5 = arith.addf %3, %4 : vector<8x128xf32>
    %cst_5 = arith.constant 0.00999999977 : f32
    %6 = vector.broadcast %cst_5 : f32 to vector<8x128xf32>
    %7 = arith.mulf %6, %5 : vector<8x128xf32>
    %8 = arith.maximumf %5, %7 : vector<8x128xf32>
    %9 = arith.truncf %8 : vector<8x128xf32> to vector<8x128xbf16>
    %c0_6 = arith.constant 0 : index
    %c0_7 = arith.constant 0 : index
    %10 = vector.load %arg5[%c0_6, %c0_7] : memref<128x128xbf16, #tpu.memory_space<vmem>>, vector<128x128xbf16>
    %c0_8 = arith.constant 0 : index
    %c0_9 = arith.constant 0 : index
    %11 = vector.load %arg6[%c0_8, %c0_9] : memref<1x128xf32, #tpu.memory_space<vmem>>, vector<1x128xf32>
    %cst_10 = arith.constant dense<0.000000e+00> : vector<8x128xf32>
    %12 = tpu.matmul %9, %10, %cst_10 {dimension_numbers = #tpu.dot_dimension_numbers<[1], [0], [0], [1], [0, 0, 1, 1], [], []>} : vector<8x128xbf16>, vector<128x128xbf16>, vector<8x128xf32> -> vector<8x128xf32>
    %13 = vector.broadcast %11 : vector<1x128xf32> to vector<8x128xf32>
    %14 = arith.addf %12, %13 : vector<8x128xf32>
    %cst_11 = arith.constant 0.00999999977 : f32
    %15 = vector.broadcast %cst_11 : f32 to vector<8x128xf32>
    %16 = arith.mulf %15, %14 : vector<8x128xf32>
    %17 = arith.maximumf %14, %16 : vector<8x128xf32>
    %18 = arith.truncf %17 : vector<8x128xf32> to vector<8x128xbf16>
    %c0_12 = arith.constant 0 : index
    %c0_13 = arith.constant 0 : index
    %19 = vector.load %arg7[%c0_12, %c0_13] : memref<128x128xbf16, #tpu.memory_space<vmem>>, vector<128x128xbf16>
    %c0_14 = arith.constant 0 : index
    %c0_15 = arith.constant 0 : index
    %20 = vector.load %arg8[%c0_14, %c0_15] : memref<1x128xf32, #tpu.memory_space<vmem>>, vector<1x128xf32>
    %cst_16 = arith.constant dense<0.000000e+00> : vector<8x128xf32>
    %21 = tpu.matmul %18, %19, %cst_16 {dimension_numbers = #tpu.dot_dimension_numbers<[1], [0], [0], [1], [0, 0, 1, 1], [], []>} : vector<8x128xbf16>, vector<128x128xbf16>, vector<8x128xf32> -> vector<8x128xf32>
    %22 = vector.broadcast %20 : vector<1x128xf32> to vector<8x128xf32>
    %23 = arith.addf %21, %22 : vector<8x128xf32>
    %24 = tpu.iota {dimensions = array<i32: 1>} : vector<8x128xi32>
    %c8_i32 = arith.constant 8 : i32
    %25 = vector.broadcast %c8_i32 : i32 to vector<8x128xi32>
    %26 = arith.cmpi slt, %24, %25 : vector<8x128xi32>
    %cst_17 = arith.constant -1.000000e+30 : f32
    %27 = vector.broadcast %cst_17 : f32 to vector<8x128xf32>
    %28 = arith.select %26, %23, %27 : vector<8x128xi1>, vector<8x128xf32>
    %cst_18 = arith.constant dense<0xFF800000> : vector<8xf32>
    %29 = vector.multi_reduction <maximumf>, %28, %cst_18 [1] : vector<8x128xf32> to vector<8xf32>
    %30 = vector.shape_cast %29 : vector<8xf32> to vector<8x1xf32>
    %31 = vector.broadcast %30 : vector<8x1xf32> to vector<8x128xf32>
    %32 = arith.subf %28, %31 : vector<8x128xf32>
    %33 = math.exp %32 : vector<8x128xf32>
    %cst_19 = arith.constant dense<0.000000e+00> : vector<8xf32>
    %34 = vector.multi_reduction <add>, %33, %cst_19 [1] : vector<8x128xf32> to vector<8xf32>
    %35 = vector.shape_cast %34 : vector<8xf32> to vector<8x1xf32>
    %36 = math.log %35 : vector<8x1xf32>
    %37 = vector.broadcast %36 : vector<8x1xf32> to vector<8x128xf32>
    %38 = arith.subf %32, %37 : vector<8x128xf32>
    %c0_20 = arith.constant 0 : index
    %c0_21 = arith.constant 0 : index
    %39 = vector.load %arg9[%c0_20, %c0_21] : memref<8x128xf32, #tpu.memory_space<vmem>>, vector<8x128xf32>
    tpu.vector_store %arg9[%c0_20, %c0_21], %38 {strides = array<i32>} : memref<8x128xf32, #tpu.memory_space<vmem>>, vector<8x128xf32>,
    return
  }
  func.func @transform_0(%arg0: i32) -> i32 {
    %c0_i32 = arith.constant 0 : i32
    %c0_i32_0 = arith.constant 0 : i32
    return %c0_i32 : i32
  }
  func.func @transform_1(%arg0: i32) -> (i32, i32) {
    %c0_i32 = arith.constant 0 : i32
    %c0_i32_0 = arith.constant 0 : i32
    return %arg0, %c0_i32 : i32, i32
  }
  func.func @transform_2(%arg0: i32) -> (i32, i32) {
    %c0_i32 = arith.constant 0 : i32
    %c0_i32_0 = arith.constant 0 : i32
    %c0_i32_1 = arith.constant 0 : i32
    return %c0_i32, %c0_i32_0 : i32, i32
  }
  func.func @transform_3(%arg0: i32) -> (i32, i32) {
    %c0_i32 = arith.constant 0 : i32
    %c0_i32_0 = arith.constant 0 : i32
    %c0_i32_1 = arith.constant 0 : i32
    return %c0_i32, %c0_i32_0 : i32, i32
  }
  func.func @transform_4(%arg0: i32) -> (i32, i32) {
    %c0_i32 = arith.constant 0 : i32
    %c0_i32_0 = arith.constant 0 : i32
    %c0_i32_1 = arith.constant 0 : i32
    return %c0_i32, %c0_i32_0 : i32, i32
  }
  func.func @transform_5(%arg0: i32) -> (i32, i32) {
    %c0_i32 = arith.constant 0 : i32
    %c0_i32_0 = arith.constant 0 : i32
    %c0_i32_1 = arith.constant 0 : i32
    return %c0_i32, %c0_i32_0 : i32, i32
  }
  func.func @transform_6(%arg0: i32) -> (i32, i32) {
    %c0_i32 = arith.constant 0 : i32
    %c0_i32_0 = arith.constant 0 : i32
    %c0_i32_1 = arith.constant 0 : i32
    return %c0_i32, %c0_i32_0 : i32, i32
  }
  func.func @transform_7(%arg0: i32) -> (i32, i32) {
    %c0_i32 = arith.constant 0 : i32
    %c0_i32_0 = arith.constant 0 : i32
    %c0_i32_1 = arith.constant 0 : i32
    return %c0_i32, %c0_i32_0 : i32, i32
  }
  func.func @transform_8(%arg0: i32) -> (i32, i32) {
    %c0_i32 = arith.constant 0 : i32
    %c0_i32_0 = arith.constant 0 : i32
    return %arg0, %c0_i32 : i32, i32
  }
}

</mosaic_0001>

<llo_original>
// kernel: mlp_forward.1
$region0: #{mlp_forward.1}
  #allocation0 [shape = 'u32[]', space=smem, size = 0x4, offset = 0x4, fixed_abs, tag = 'smem constant byte address 0x4 - core index']
  #allocation1 [shape = 'u32[144,128]{1,0:T(1,128)}', space=vmem, size = 0x12000, scoped, tag = 'internal scratch']
  #allocation2 [shape = 's32[1]{0:T(128)S(6)}', space=smem, size = 0x200, scoped, tag = 'scoped memory for mlp_forward.1']
  %s0 = inlined_call_operand.<no memory space> [shape: s32[1], index: 0, kind: input, shape index: {}]
  %s1 = inlined_call_operand.vmem [shape: bf16[8,128], index: 1, kind: input, shape index: {}]
  %s2 = inlined_call_operand.hbm [shape: bf16[128,128], index: 2, kind: input, shape index: {}]
  %s3 = inlined_call_operand.vmem [shape: f32[1,128], index: 3, kind: input, shape index: {}]
  %s4 = inlined_call_operand.hbm [shape: bf16[128,128], index: 4, kind: input, shape index: {}]
  %s5 = inlined_call_operand.vmem [shape: f32[1,128], index: 5, kind: input, shape index: {}]
  %s6 = inlined_call_operand.hbm [shape: bf16[128,128], index: 6, kind: input, shape index: {}]
  %s7 = inlined_call_operand.vmem [shape: f32[1,128], index: 7, kind: input, shape index: {}]
  %s8 = inlined_call_operand.hbm [shape: f32[8,128], index: 8, kind: output, shape index: {}]
  %s9 = sld [smem:[#allocation0]]
  $region54: #{mlp_forward.1} parent=0
    _
  %s11 = ssub.s32 1, %s9
  %s12 = scalar_select 0, %s11, %s9
  %13 = sst [smem:[#allocation2]] %s0
  $region1: #{mlp_forward.1} parent=0
    #allocation3 [shape = 'u8[32768]{0}', space=vmem, size = 0x8000, scoped, tag = 'input window, operand 2, single buffered']
    #allocation4 [shape = 's32[1]{0}', space=sflag, size = 0x4, scoped, tag = 'scoped memory for mlp_forward.1']
    #allocation5 [shape = 's32[1]{0}', space=sflag, size = 0x4, scoped, tag = 'scoped memory for mlp_forward.1']
    #allocation6 [shape = 'u8[32768]{0}', space=vmem, size = 0x8000, scoped, tag = 'input window, operand 4, single buffered']
    #allocation7 [shape = 's32[1]{0}', space=sflag, size = 0x4, scoped, tag = 'scoped memory for mlp_forward.1']
    #allocation8 [shape = 'u8[32768]{0}', space=vmem, size = 0x8000, scoped, tag = 'input window, operand 6, single buffered']
    #allocation9 [shape = 'u8[4096]{0}', space=vmem, size = 0x1000, scoped, tag = 'output window, operand 0, single buffered']
    %14 = vsyncpa [#allocation4], 0
    %15 = vsyncpa [#allocation7], 0
    %16 = vsyncpa [#allocation5], 0
    // Predicated region
    $region2: #{mlp_forward.1} parent=1 // pred_check
      _
    $region3: #{mlp_forward.1} parent=1 // pred_check_branch
      %18 = sbr.rel (0) target = $region5
    $region4: #{mlp_forward.1} parent=1 // pred_region
      _
    $region5: #{mlp_forward.1} parent=1 // pred_fallthru
      _
    // Predicated region
    $region6: #{mlp_forward.1} parent=1 // pred_check
      _
    $region7: #{mlp_forward.1} parent=1 // pred_check_branch
      %20 = sbr.rel (0) target = $region9
    $region8: #{mlp_forward.1} parent=1 // pred_region
      _
    $region9: #{mlp_forward.1} parent=1 // pred_fallthru
      _
    // Predicated region
    $region10: #{mlp_forward.1} parent=1 // pred_check
      _
    $region11: #{mlp_forward.1} parent=1 // pred_check_branch
      %22 = sbr.rel (0) target = $region13
    $region12: #{mlp_forward.1} parent=1 // pred_region
      %s24 = ssub.s32 1024, 1024
      %25 = vsyncadd [#allocation4], %s24
      %s26 = sshll.u32 [#allocation3], 4
      %s27 = int_to_ptr.vmem [resolvable:$true] %s26
      %32 = dma.hbm_to_vmem [thread:$0]  %s2, 1024, %s27, [#allocation4], 64, 64, 4
    $region13: #{mlp_forward.1} parent=1 // pred_fallthru
      _
    // Predicated region
    $region14: #{mlp_forward.1} parent=1 // pred_check
      _
    $region15: #{mlp_forward.1} parent=1 // pred_check_branch
      %34 = sbr.rel (0) target = $region17
    $region16: #{mlp_forward.1} parent=1 // pred_region
      _
    $region17: #{mlp_forward.1} parent=1 // pred_fallthru
      _
    // Predicated region
    $region18: #{mlp_forward.1} parent=1 // pred_check
      _
    $region19: #{mlp_forward.1} parent=1 // pred_check_branch
      %36 = sbr.rel (0) target = $region21
    $region20: #{mlp_forward.1} parent=1 // pred_region
      %s38 = ssub.s32 1024, 1024
      %39 = vsyncadd [#allocation7], %s38
      %s40 = sshll.u32 [#allocation6], 4
      %s41 = int_to_ptr.vmem [resolvable:$true] %s40
      %46 = dma.hbm_to_vmem [thread:$0]  %s4, 1024, %s41, [#allocation7], 64, 64, 4
    $region21: #{mlp_forward.1} parent=1 // pred_fallthru
      _
    // Predicated region
    $region22: #{mlp_forward.1} parent=1 // pred_check
      _
    $region23: #{mlp_forward.1} parent=1 // pred_check_branch
      %48 = sbr.rel (0) target = $region25
    $region24: #{mlp_forward.1} parent=1 // pred_region
      _
    $region25: #{mlp_forward.1} parent=1 // pred_fallthru
      _
    // Predicated region
    $region26: #{mlp_forward.1} parent=1 // pred_check
      _
    $region27: #{mlp_forward.1} parent=1 // pred_check_branch
      %50 = sbr.rel (0) target = $region29
    $region28: #{mlp_forward.1} parent=1 // pred_region
      %s52 = ssub.s32 1024, 1024
      %53 = vsyncadd [#allocation7], %s52
      %s54 = sshll.u32 [#allocation8], 4
      %s55 = int_to_ptr.vmem [resolvable:$true] %s54
      %60 = dma.hbm_to_vmem [thread:$0]  %s6, 1024, %s55, [#allocation7], 64, 64, 4
    $region29: #{mlp_forward.1} parent=1 // pred_fallthru
      _
    // Predicated region
    $region30: #{mlp_forward.1} parent=1 // pred_check
      _
    $region31: #{mlp_forward.1} parent=1 // pred_check_branch
      %62 = sbr.rel (0) target = $region33
    $region32: #{mlp_forward.1} parent=1 // pred_region
      _
    $region33: #{mlp_forward.1} parent=1 // pred_fallthru
      _
    // Predicated region
    $region34: #{mlp_forward.1} parent=1 // pred_check
      _
    $region35: #{mlp_forward.1} parent=1 // pred_check_branch
      %64 = sbr.rel (0) target = $region37
    $region36: #{mlp_forward.1} parent=1 // pred_region
      %65 = dma.done [#allocation4], 1024
    $region37: #{mlp_forward.1} parent=1 // pred_fallthru
      _
    // Predicated region
    $region38: #{mlp_forward.1} parent=1 // pred_check
      _
    $region39: #{mlp_forward.1} parent=1 // pred_check_branch
      %67 = sbr.rel (0) target = $region41
    $region40: #{mlp_forward.1} parent=1 // pred_region
      %68 = dma.done [#allocation7], 1024
    $region41: #{mlp_forward.1} parent=1 // pred_fallthru
      _
    // Predicated region
    $region42: #{mlp_forward.1} parent=1 // pred_check
      _
    $region43: #{mlp_forward.1} parent=1 // pred_check_branch
      %70 = sbr.rel (0) target = $region45
    $region44: #{mlp_forward.1} parent=1 // pred_region
      %71 = dma.done [#allocation7], 1024
    $region45: #{mlp_forward.1} parent=1 // pred_fallthru
      _
    %v73 = vld [vmem:[%s1] sm:$0xf]
    %v74 = vld [vmem:[#allocation3] sm:$0xf]
    %v75 = vld [vmem:[#allocation3 + $0x4] sm:$0xf]
    %v76 = vld [vmem:[#allocation3 + $0x8] sm:$0xf]
    %v77 = vld [vmem:[#allocation3 + $0xc] sm:$0xf]
    %v78 = vld [vmem:[#allocation3 + $0x10] sm:$0xf]
    %v79 = vld [vmem:[#allocation3 + $0x14] sm:$0xf]
    %v80 = vld [vmem:[#allocation3 + $0x18] sm:$0xf]
    %v81 = vld [vmem:[#allocation3 + $0x1c] sm:$0xf]
    %v82 = vld [vmem:[#allocation3 + $0x20] sm:$0xf]
    %v83 = vld [vmem:[#allocation3 + $0x24] sm:$0xf]
    %v84 = vld [vmem:[#allocation3 + $0x28] sm:$0xf]
    %v85 = vld [vmem:[#allocation3 + $0x2c] sm:$0xf]
    %v86 = vld [vmem:[#allocation3 + $0x30] sm:$0xf]
    %v87 = vld [vmem:[#allocation3 + $0x34] sm:$0xf]
    %v88 = vld [vmem:[#allocation3 + $0x38] sm:$0xf]
    %v89 = vld [vmem:[#allocation3 + $0x3c] sm:$0xf]
    %v90 = vld [vmem:[%s3] sm:$0x1]
    %v92 = vlaneseq
    %v93 = vshrl.u32 %v92, 7
    %v94 = vsub.s32 0, %v93
    %v95 = vrot.slane %v90, %v94
    %v113 = vunpack.c.l.b16 %v74
    %v114 = vunpack.c.l.b16 %v75
    %v115 = vunpack.c.l.b16 %v76
    %v116 = vunpack.c.l.b16 %v77
    %v117 = vunpack.c.l.b16 %v78
    %v118 = vunpack.c.l.b16 %v79
    %v119 = vunpack.c.l.b16 %v80
    %v120 = vunpack.c.l.b16 %v81
    %v121 = vunpack.c.l.b16 %v82
    %v122 = vunpack.c.l.b16 %v83
    %v123 = vunpack.c.l.b16 %v84
    %v124 = vunpack.c.l.b16 %v85
    %v125 = vunpack.c.l.b16 %v86
    %v126 = vunpack.c.l.b16 %v87
    %v127 = vunpack.c.l.b16 %v88
    %v128 = vunpack.c.l.b16 %v89
    %v129 = vpack.c.b16 %v114, %v113
    %v130 = vpack.c.b16 %v116, %v115
    %v131 = vpack.c.b16 %v118, %v117
    %v132 = vpack.c.b16 %v120, %v119
    %v133 = vpack.c.b16 %v122, %v121
    %v134 = vpack.c.b16 %v124, %v123
    %v135 = vpack.c.b16 %v126, %v125
    %v136 = vpack.c.b16 %v128, %v127
    %145 = vmatprep.subr.bf16.mxu0 0
    %146 = vmatpush1.bf16.msra.mxu0 %v136
    %147 = vmatprep.subr.bf16.mxu0 0
    %148 = vmatpush1.bf16.msra.mxu0 %v135
    %149 = vmatprep.subr.bf16.mxu0 0
    %150 = vmatpush1.bf16.msra.mxu0 %v134
    %151 = vmatprep.subr.bf16.mxu0 0
    %152 = vmatpush1.bf16.msra.mxu0 %v133
    %153 = vmatprep.subr.bf16.mxu0 0
    %154 = vmatpush1.bf16.msra.mxu0 %v132
    %155 = vmatprep.subr.bf16.mxu0 0
    %156 = vmatpush1.bf16.msra.mxu0 %v131
    %157 = vmatprep.subr.bf16.mxu0 0
    %158 = vmatpush1.bf16.msra.mxu0 %v130
    %159 = vmatprep.subr.bf16.mxu0 0
    %160 = vmatpush1.bf16.msra.mxu0 %v129
    %161 = vmatprep.subr.bf16.mxu0 0
    %162 = vmatpush2.bf16.msra.mxu0 0
    %163 = vmatprep.subr.bf16.mxu0 0
    %164 = vmatpush2.bf16.msra.mxu0 0
    %165 = vmatprep.subr.bf16.mxu0 0
    %166 = vmatpush2.bf16.msra.mxu0 0
    %167 = vmatprep.subr.bf16.mxu0 0
    %168 = vmatpush2.bf16.msra.mxu0 0
    %169 = vmatprep.subr.bf16.mxu0 0
    %170 = vmatpush2.bf16.msra.mxu0 0
    %171 = vmatprep.subr.bf16.mxu0 0
    %172 = vmatpush2.bf16.msra.mxu0 0
    %173 = vmatprep.subr.bf16.mxu0 0
    %174 = vmatpush2.bf16.msra.mxu0 0
    %175 = vmatprep.subr.bf16.mxu0 0
    %176 = vmatpush2.bf16.msra.mxu0 0
    %177 = vmatprep.mubr.bf16.mxu0 0
    %178 = vmatmul.mubr.bf16.gmra.mxu0 %v73
    %v179 = vpop.f32.mrf.mxu0
    %v180 = vadd.f32 %v95, %v179
    %v181 = vpop.f32.mrf.mxu0
    %v182 = vpop.f32.mrf.mxu0
    %v183 = vpop.f32.mrf.mxu0
    %184 = vdwg.mxu0
    %v185 = vmul.f32 %v180, 0.01
    %v186 = vmax.f32 %v180, %v185
    %v187 = vpack.c.bf16 %v186, %v186
    %v188 = vld [vmem:[#allocation6] sm:$0xf]
    %v189 = vld [vmem:[#allocation6 + $0x4] sm:$0xf]
    %v190 = vld [vmem:[#allocation6 + $0x8] sm:$0xf]
    %v191 = vld [vmem:[#allocation6 + $0xc] sm:$0xf]
    %v192 = vld [vmem:[#allocation6 + $0x10] sm:$0xf]
    %v193 = vld [vmem:[#allocation6 + $0x14] sm:$0xf]
    %v194 = vld [vmem:[#allocation6 + $0x18] sm:$0xf]
    %v195 = vld [vmem:[#allocation6 + $0x1c] sm:$0xf]
    %v196 = vld [vmem:[#allocation6 + $0x20] sm:$0xf]
    %v197 = vld [vmem:[#allocation6 + $0x24] sm:$0xf]
    %v198 = vld [vmem:[#allocation6 + $0x28] sm:$0xf]
    %v199 = vld [vmem:[#allocation6 + $0x2c] sm:$0xf]
    %v200 = vld [vmem:[#allocation6 + $0x30] sm:$0xf]
    %v201 = vld [vmem:[#allocation6 + $0x34] sm:$0xf]
    %v202 = vld [vmem:[#allocation6 + $0x38] sm:$0xf]
    %v203 = vld [vmem:[#allocation6 + $0x3c] sm:$0xf]
    %v204 = vld [vmem:[%s5] sm:$0x1]
    %v206 = vlaneseq
    %v207 = vshrl.u32 %v206, 7
    %v208 = vsub.s32 0, %v207
    %v209 = vrot.slane %v204, %v208
    %v227 = vunpack.c.l.b16 %v188
    %v228 = vunpack.c.l.b16 %v189
    %v229 = vunpack.c.l.b16 %v190
    %v230 = vunpack.c.l.b16 %v191
    %v231 = vunpack.c.l.b16 %v192
    %v232 = vunpack.c.l.b16 %v193
    %v233 = vunpack.c.l.b16 %v194
    %v234 = vunpack.c.l.b16 %v195
    %v235 = vunpack.c.l.b16 %v196
    %v236 = vunpack.c.l.b16 %v197
    %v237 = vunpack.c.l.b16 %v198
    %v238 = vunpack.c.l.b16 %v199
    %v239 = vunpack.c.l.b16 %v200
    %v240 = vunpack.c.l.b16 %v201
    %v241 = vunpack.c.l.b16 %v202
    %v242 = vunpack.c.l.b16 %v203
    %v243 = vpack.c.b16 %v228, %v227
    %v244 = vpack.c.b16 %v230, %v229
    %v245 = vpack.c.b16 %v232, %v231
    %v246 = vpack.c.b16 %v234, %v233
    %v247 = vpack.c.b16 %v236, %v235
    %v248 = vpack.c.b16 %v238, %v237
    %v249 = vpack.c.b16 %v240, %v239
    %v250 = vpack.c.b16 %v242, %v241
    %259 = vmatprep.subr.bf16.mxu0 0
    %260 = vmatpush1.bf16.msra.mxu0 %v250
    %261 = vmatprep.subr.bf16.mxu0 0
    %262 = vmatpush1.bf16.msra.mxu0 %v249
    %263 = vmatprep.subr.bf16.mxu0 0
    %264 = vmatpush1.bf16.msra.mxu0 %v248
    %265 = vmatprep.subr.bf16.mxu0 0
    %266 = vmatpush1.bf16.msra.mxu0 %v247
    %267 = vmatprep.subr.bf16.mxu0 0
    %268 = vmatpush1.bf16.msra.mxu0 %v246
    %269 = vmatprep.subr.bf16.mxu0 0
    %270 = vmatpush1.bf16.msra.mxu0 %v245
    %271 = vmatprep.subr.bf16.mxu0 0
    %272 = vmatpush1.bf16.msra.mxu0 %v244
    %273 = vmatprep.subr.bf16.mxu0 0
    %274 = vmatpush1.bf16.msra.mxu0 %v243
    %275 = vmatprep.subr.bf16.mxu0 0
    %276 = vmatpush2.bf16.msra.mxu0 0
    %277 = vmatprep.subr.bf16.mxu0 0
    %278 = vmatpush2.bf16.msra.mxu0 0
    %279 = vmatprep.subr.bf16.mxu0 0
    %280 = vmatpush2.bf16.msra.mxu0 0
    %281 = vmatprep.subr.bf16.mxu0 0
    %282 = vmatpush2.bf16.msra.mxu0 0
    %283 = vmatprep.subr.bf16.mxu0 0
    %284 = vmatpush2.bf16.msra.mxu0 0
    %285 = vmatprep.subr.bf16.mxu0 0
    %286 = vmatpush2.bf16.msra.mxu0 0
    %287 = vmatprep.subr.bf16.mxu0 0
    %288 = vmatpush2.bf16.msra.mxu0 0
    %289 = vmatprep.subr.bf16.mxu0 0
    %290 = vmatpush2.bf16.msra.mxu0 0
    %291 = vmatprep.mubr.bf16.mxu0 0
    %292 = vmatmul.mubr.bf16.gmra.mxu0 %v187
    %v293 = vpop.f32.mrf.mxu0
    %v294 = vadd.f32 %v209, %v293
    %v295 = vpop.f32.mrf.mxu0
    %v296 = vpop.f32.mrf.mxu0
    %v297 = vpop.f32.mrf.mxu0
    %298 = vdwg.mxu0
    %v299 = vmul.f32 %v294, 0.01
    %v300 = vmax.f32 %v294, %v299
    %v301 = vpack.c.bf16 %v300, %v300
    %v302 = vld [vmem:[#allocation8] sm:$0xf]
    %v303 = vld [vmem:[#allocation8 + $0x4] sm:$0xf]
    %v304 = vld [vmem:[#allocation8 + $0x8] sm:$0xf]
    %v305 = vld [vmem:[#allocation8 + $0xc] sm:$0xf]
    %v306 = vld [vmem:[#allocation8 + $0x10] sm:$0xf]
    %v307 = vld [vmem:[#allocation8 + $0x14] sm:$0xf]
    %v308 = vld [vmem:[#allocation8 + $0x18] sm:$0xf]
    %v309 = vld [vmem:[#allocation8 + $0x1c] sm:$0xf]
    %v310 = vld [vmem:[#allocation8 + $0x20] sm:$0xf]
    %v311 = vld [vmem:[#allocation8 + $0x24] sm:$0xf]
    %v312 = vld [vmem:[#allocation8 + $0x28] sm:$0xf]
    %v313 = vld [vmem:[#allocation8 + $0x2c] sm:$0xf]
    %v314 = vld [vmem:[#allocation8 + $0x30] sm:$0xf]
    %v315 = vld [vmem:[#allocation8 + $0x34] sm:$0xf]
    %v316 = vld [vmem:[#allocation8 + $0x38] sm:$0xf]
    %v317 = vld [vmem:[#allocation8 + $0x3c] sm:$0xf]
    %v318 = vld [vmem:[%s7] sm:$0x1]
    %v320 = vlaneseq
    %v321 = vshrl.u32 %v320, 7
    %v322 = vsub.s32 0, %v321
    %v323 = vrot.slane %v318, %v322
    %v341 = vunpack.c.l.b16 %v302
    %v342 = vunpack.c.l.b16 %v303
    %v343 = vunpack.c.l.b16 %v304
    %v344 = vunpack.c.l.b16 %v305
    %v345 = vunpack.c.l.b16 %v306
    %v346 = vunpack.c.l.b16 %v307
    %v347 = vunpack.c.l.b16 %v308
    %v348 = vunpack.c.l.b16 %v309
    %v349 = vunpack.c.l.b16 %v310
    %v350 = vunpack.c.l.b16 %v311
    %v351 = vunpack.c.l.b16 %v312
    %v352 = vunpack.c.l.b16 %v313
    %v353 = vunpack.c.l.b16 %v314
    %v354 = vunpack.c.l.b16 %v315
    %v355 = vunpack.c.l.b16 %v316
    %v356 = vunpack.c.l.b16 %v317
    %v357 = vpack.c.b16 %v342, %v341
    %v358 = vpack.c.b16 %v344, %v343
    %v359 = vpack.c.b16 %v346, %v345
    %v360 = vpack.c.b16 %v348, %v347
    %v361 = vpack.c.b16 %v350, %v349
    %v362 = vpack.c.b16 %v352, %v351
    %v363 = vpack.c.b16 %v354, %v353
    %v364 = vpack.c.b16 %v356, %v355
    %373 = vmatprep.subr.bf16.mxu0 0
    %374 = vmatpush1.bf16.msra.mxu0 %v364
    %375 = vmatprep.subr.bf16.mxu0 0
    %376 = vmatpush1.bf16.msra.mxu0 %v363
    %377 = vmatprep.subr.bf16.mxu0 0
    %378 = vmatpush1.bf16.msra.mxu0 %v362
    %379 = vmatprep.subr.bf16.mxu0 0
    %380 = vmatpush1.bf16.msra.mxu0 %v361
    %381 = vmatprep.subr.bf16.mxu0 0
    %382 = vmatpush1.bf16.msra.mxu0 %v360
    %383 = vmatprep.subr.bf16.mxu0 0
    %384 = vmatpush1.bf16.msra.mxu0 %v359
    %385 = vmatprep.subr.bf16.mxu0 0
    %386 = vmatpush1.bf16.msra.mxu0 %v358
    %387 = vmatprep.subr.bf16.mxu0 0
    %388 = vmatpush1.bf16.msra.mxu0 %v357
    %389 = vmatprep.subr.bf16.mxu0 0
    %390 = vmatpush2.bf16.msra.mxu0 0
    %391 = vmatprep.subr.bf16.mxu0 0
    %392 = vmatpush2.bf16.msra.mxu0 0
    %393 = vmatprep.subr.bf16.mxu0 0
    %394 = vmatpush2.bf16.msra.mxu0 0
    %395 = vmatprep.subr.bf16.mxu0 0
    %396 = vmatpush2.bf16.msra.mxu0 0
    %397 = vmatprep.subr.bf16.mxu0 0
    %398 = vmatpush2.bf16.msra.mxu0 0
    %399 = vmatprep.subr.bf16.mxu0 0
    %400 = vmatpush2.bf16.msra.mxu0 0
    %401 = vmatprep.subr.bf16.mxu0 0
    %402 = vmatpush2.bf16.msra.mxu0 0
    %403 = vmatprep.subr.bf16.mxu0 0
    %404 = vmatpush2.bf16.msra.mxu0 0
    %405 = vmatprep.mubr.bf16.mxu0 0
    %406 = vmatmul.mubr.bf16.gmra.mxu0 %v301
    %v407 = vpop.f32.mrf.mxu0
    %v408 = vadd.f32 %v323, %v407
    %v409 = vpop.f32.mrf.mxu0
    %v410 = vpop.f32.mrf.mxu0
    %v411 = vpop.f32.mrf.mxu0
    %412 = vdwg.mxu0
    %v413 = vlaneseq
    %v414 = vand.u32 %v413, 127
    %vm415 = vcmp.lt.s32.totalorder %v414, 8
    %v416 = vsel %vm415, %v408, -1e+30
    %417 = vmax.xlane.f32.xlu0 %v416
    %v418 = vpop.xlane.xlu0 %417
    %v419 = vsub.f32 %v416, %v418
    %v420 = vmul.f32 %v419, 1.442695
    %v421 = vpow.pop %v420
    %422 = vadd.xlane.f32.xlu0 %v421
    %v423 = vpop.xlane.xlu0 %422
    %v424 = vlog2.pop %v423
    %v425 = vmul.f32 %v424, 0.6931472
    %v426 = vsub.f32 %v419, %v425
    %427 = vst [vmem:[#allocation9] sm:$0xff] %v426
    // Predicated region
    $region46: #{mlp_forward.1} parent=1 // pred_check
      _
    $region47: #{mlp_forward.1} parent=1 // pred_check_branch
      %429 = sbr.rel (0) target = $region49
    $region48: #{mlp_forward.1} parent=1 // pred_region
      %s431 = ssub.s32 128, 128
      %432 = vsyncadd [#allocation5], %s431
      %s434 = sshll.u32 [#allocation9], 4
      %s435 = int_to_ptr.vmem [resolvable:$true] %s434
      %437 = dma.vmem_to_hbm [thread:$0]  %s435, 128, %s8, [#allocation5]
    $region49: #{mlp_forward.1} parent=1 // pred_fallthru
      _
    // Predicated region
    $region50: #{mlp_forward.1} parent=1 // pred_check
      _
    $region51: #{mlp_forward.1} parent=1 // pred_check_branch
      %439 = sbr.rel (0) target = $region53
    $region52: #{mlp_forward.1} parent=1 // pred_region
      %440 = dma.done [#allocation5], 128
    $region53: #{mlp_forward.1} parent=1 // pred_fallthru
      _
    %441 = vsyncpa [#allocation4], 1
    %442 = vsyncpa [#allocation7], 1
    %443 = vsyncpa [#allocation5], 1

</llo_original>
